<compile_context>
chip_gen: v7x
topology: tpu7x:2x2x1
jax: 0.10.0
libtpu: 0.0.40
codegen_flags: <defaults>
</compile_context>

<pallas_src>
import jax
import jax.numpy as jnp
from jax.experimental import pallas as pl
from jax.experimental.pallas import tpu as pltpu

LAYER_DIMS = [(12, 24), (24, 48), (48, 48), (48, 48), (48, 1)]
N_LAYERS = len(LAYER_DIMS)
IN_F = 12        # input feature width
WMAX = 48        # max feature width -> packed weight/bias slot size
LANE = 128       # TPU lane width; batch tiles are multiples of this
BM_MAX = 1024    # max batch-lane tile (sweep 512/1024/2048 for huge batches)


def _cdiv(a, b):
    return -(-a // b)


def _round_up(v, m):
    return _cdiv(v, m) * m


def _num_tensorcores():
    # v7x has 2 TensorCores per chip; v5e/v6e have 1.
    try:
        kind = jax.devices()[0].device_kind.lower()
    except Exception:
        return 1
    return 2 if "v7" in kind else 1


def _batch_tiling(batch):
    """Pick (BM, padded_batch, n_steps): lane tile, padded batch, grid size."""
    n_steps = max(_cdiv(batch, BM_MAX),                         # respect tile cap
                  min(_num_tensorcores(), _cdiv(batch, LANE)))  # keep both v7x TCs busy
    bm = _round_up(_cdiv(batch, n_steps), LANE)
    return bm, bm * n_steps, n_steps


def _mish(z, out_dtype):
    # mish(z) = z * tanh(softplus(z)).
    # One-exp rewrite: with e = exp(z), n = (1+e)^2, tanh(log(1+e)) = (n-1)/(n+1).
    # Clamp keeps exp finite in f32; for z >= 20, tanh(softplus(z)) == 1 in f32
    # so the formula still returns ~z.  Squaring/reciprocal stay f32 (bf16
    # would lose the mantissa near the clamp); the cast to the dtype the next
    # matmul consumes is fused into the final multiply.
    e = jnp.exp(jnp.minimum(z, 20.0))
    n = (1.0 + e) * (1.0 + e)
    t = (n - 1.0) * pl.reciprocal(n + 1.0, approx=True)
    return (z * t).astype(out_dtype)


def _mlp_kernel(x_ref, w_ref, b_ref, o_ref):
    # x_ref: (12, BM) f32   w_ref: (5, 48, 48) bf16   b_ref: (5, 48, 1) f32
    # o_ref: (1, BM) f32.   Activations are (features, batch): features on
    # sublanes (12/24/48 rows), batch on lanes (no 128-lane padding waste).
    h = x_ref[...].astype(jnp.bfloat16)                          # (12, BM)
    for l, (fi, fo) in enumerate(LAYER_DIMS[:-1]):
        w = w_ref[l, :fo, :fi]                                   # (fo, fi) bf16
        b = b_ref[l, :fo, :]                                     # (fo, 1) f32
        z = jnp.dot(w, h, preferred_element_type=jnp.float32) + b  # (fo, BM) f32
        h = _mish(z, jnp.bfloat16)        # dropout == identity at inference
    fi, fo = LAYER_DIMS[-1]
    w = w_ref[N_LAYERS - 1, :fo, :fi]                            # (1, 48) bf16
    b = b_ref[N_LAYERS - 1, :fo, :]                              # (1, 1) f32
    o_ref[...] = (jnp.dot(w, h, preferred_element_type=jnp.float32)
                  + b).astype(o_ref.dtype)                       # lane-dense (1, BM)


def init_params(key):
    """Packed kernel parameters.

    Returns:
      w_pack: (5, 48, 48) bf16 -- slot l holds layer l's weight in PyTorch
              (out_f, in_f) layout at [:out_f, :in_f], zeros elsewhere.
      b_pack: (5, 48, 1) f32 -- slot l holds layer l's bias at [:out_f, 0].

    Hidden layers: xavier_uniform weights + zero bias (the module's explicit
    init).  Output layer: PyTorch nn.Linear default-style uniform init.
    """
    w_pack = jnp.zeros((N_LAYERS, WMAX, WMAX), jnp.bfloat16)
    b_pack = jnp.zeros((N_LAYERS, WMAX, 1), jnp.float32)
    for l, (fi, fo) in enumerate(LAYER_DIMS):
        key, kw, kb = jax.random.split(key, 3)
        if l < N_LAYERS - 1:
            limit = (6.0 / (fi + fo)) ** 0.5
            w = jax.random.uniform(kw, (fo, fi), jnp.float32, -limit, limit)
            b = jnp.zeros((fo,), jnp.float32)
        else:
            limit = 1.0 / (fi ** 0.5)
            w = jax.random.uniform(kw, (fo, fi), jnp.float32, -limit, limit)
            b = jax.random.uniform(kb, (fo,), jnp.float32, -limit, limit)
        w_pack = w_pack.at[l, :fo, :fi].set(w.astype(jnp.bfloat16))
        b_pack = b_pack.at[l, :fo, 0].set(b)
    return w_pack, b_pack


@jax.jit
def taoyuan_forward(x, w_pack, b_pack):
    """x: (B, 12) float32 -> (B, 1) float32 (eval-mode forward)."""
    batch, feat = x.shape
    assert feat == IN_F
    bm, batch_pad, n_steps = _batch_tiling(batch)

    # Feed the input pre-transposed as (12, Bp); x is tiny (B*12 f32), so this
    # one-off transpose/pad copy is negligible next to the per-layer savings.
    x_t = jnp.pad(jnp.transpose(x).astype(jnp.float32),
                  ((0, 0), (0, batch_pad - batch)))

    out = pl.pallas_call(
        _mlp_kernel,
        out_shape=jax.ShapeDtypeStruct((1, batch_pad), jnp.float32),
        grid_spec=pltpu.PrefetchScalarGridSpec(
            num_scalar_prefetch=0,
            grid=(n_steps,),
            in_specs=[
                pl.BlockSpec((IN_F, bm), lambda i: (0, i)),
                pl.BlockSpec(w_pack.shape, lambda i: (0, 0, 0)),   # grid-invariant
                pl.BlockSpec(b_pack.shape, lambda i: (0, 0, 0)),   # grid-invariant
            ],
            out_specs=pl.BlockSpec((1, bm), lambda i: (0, i)),
        ),
        compiler_params=pltpu.CompilerParams(
            dimension_semantics=("parallel",)),
    )(x_t, w_pack, b_pack)

    return jnp.transpose(out[:, :batch])                          # (B, 1)


def _reference(x, w_pack, b_pack):
    """Pure-JAX f32 reference (exact mish, f32 matmuls) using the same
    bf16-stored weights the kernel consumes."""
    h = x.astype(jnp.float32)
    for l, (fi, fo) in enumerate(LAYER_DIMS):
        w = w_pack[l, :fo, :fi].astype(jnp.float32)                # (fo, fi)
        b = b_pack[l, :fo, 0]                                      # (fo,)
        h = h @ w.T + b
        if l < N_LAYERS - 1:
            h = h * jnp.tanh(jax.nn.softplus(h))
    return h


if __name__ == "__main__":
    key = jax.random.PRNGKey(0)
    kx, kp = jax.random.split(key)

    B = 12                           # small batch; pads to one 128-lane tile
    x = jax.random.normal(kx, (B, IN_F), jnp.float32)
    w_pack, b_pack = init_params(kp)

    out = jax.block_until_ready(taoyuan_forward(x, w_pack, b_pack))
    ref = _reference(x, w_pack, b_pack)

    assert out.shape == (B, 1), out.shape
    # Tolerance covers bf16 MXU inputs (f32 accumulation) and the approximate
    # EUP reciprocal inside the one-exp mish.
    assert jnp.allclose(out, ref, atol=3e-2, rtol=3e-2), (out, ref)

    print("KERNEL_OK")
</pallas_src>

<mosaic_0001>
module attributes {stable_mosaic.version = 11 : i64} {
  func.func @_mlp_kernel(%arg0: i32, %arg1: memref<12x128xf32, #tpu.memory_space<vmem>>, %arg2: memref<5x48x48xbf16, #tpu.memory_space<vmem>>, %arg3: memref<5x48x1xf32, #tpu.memory_space<vmem>>, %arg4: memref<1x128xf32, #tpu.memory_space<vmem>>) attributes {dimension_semantics = [#tpu.dimension_semantics<parallel>], iteration_bounds = array<i64: 1>, scalar_prefetch = 0 : i64, scratch_operands = 0 : i64, tpu.core_type = #tpu.core_type<tc>, window_params = [{transform_indices = @transform_0, window_bounds = array<i64: 12, 128>}, {pipeline_mode = #tpu.pipeline_mode<synchronous>, transform_indices = @transform_1, window_bounds = array<i64: 5, 48, 48>}, {pipeline_mode = #tpu.pipeline_mode<synchronous>, transform_indices = @transform_2, window_bounds = array<i64: 5, 48, 1>}, {transform_indices = @transform_3, window_bounds = array<i64: 1, 128>}]} {
    %c0 = arith.constant 0 : index
    %c0_0 = arith.constant 0 : index
    %0 = vector.load %arg1[%c0, %c0_0] : memref<12x128xf32, #tpu.memory_space<vmem>>, vector<12x128xf32>
    %1 = arith.truncf %0 : vector<12x128xf32> to vector<12x128xbf16>
    %c0_1 = arith.constant 0 : index
    %c0_2 = arith.constant 0 : index
    %c0_3 = arith.constant 0 : index
    %2 = vector.load %arg2[%c0_1, %c0_2, %c0_3] : memref<5x48x48xbf16, #tpu.memory_space<vmem>>, vector<1x24x12xbf16>
    %3 = vector.shape_cast %2 : vector<1x24x12xbf16> to vector<24x12xbf16>
    %c0_4 = arith.constant 0 : index
    %c0_5 = arith.constant 0 : index
    %c0_6 = arith.constant 0 : index
    %4 = vector.load %arg3[%c0_4, %c0_5, %c0_6] : memref<5x48x1xf32, #tpu.memory_space<vmem>>, vector<1x24x1xf32>
    %5 = vector.shape_cast %4 : vector<1x24x1xf32> to vector<24x1xf32>
    %cst = arith.constant dense<0.000000e+00> : vector<24x128xf32>
    %6 = tpu.matmul %3, %1, %cst {dimension_numbers = #tpu.dot_dimension_numbers<[1], [0], [0], [1], [0, 0, 1, 1], [], []>} : vector<24x12xbf16>, vector<12x128xbf16>, vector<24x128xf32> -> vector<24x128xf32>
    %7 = vector.broadcast %5 : vector<24x1xf32> to vector<24x128xf32>
    %8 = arith.addf %6, %7 : vector<24x128xf32>
    %cst_7 = arith.constant 2.000000e+01 : f32
    %9 = vector.broadcast %cst_7 : f32 to vector<24x128xf32>
    %10 = arith.minimumf %8, %9 : vector<24x128xf32>
    %11 = math.exp %10 : vector<24x128xf32>
    %cst_8 = arith.constant 1.000000e+00 : f32
    %12 = vector.broadcast %cst_8 : f32 to vector<24x128xf32>
    %13 = arith.addf %12, %11 : vector<24x128xf32>
    %cst_9 = arith.constant 1.000000e+00 : f32
    %14 = vector.broadcast %cst_9 : f32 to vector<24x128xf32>
    %15 = arith.addf %14, %11 : vector<24x128xf32>
    %16 = arith.mulf %13, %15 : vector<24x128xf32>
    %cst_10 = arith.constant 1.000000e+00 : f32
    %17 = vector.broadcast %cst_10 : f32 to vector<24x128xf32>
    %18 = arith.subf %16, %17 : vector<24x128xf32>
    %cst_11 = arith.constant 1.000000e+00 : f32
    %19 = vector.broadcast %cst_11 : f32 to vector<24x128xf32>
    %20 = arith.addf %16, %19 : vector<24x128xf32>
    %21 = tpu.reciprocal %20 {approx = true} : vector<24x128xf32> -> vector<24x128xf32>
    %22 = arith.mulf %18, %21 : vector<24x128xf32>
    %23 = arith.mulf %8, %22 : vector<24x128xf32>
    %24 = arith.truncf %23 : vector<24x128xf32> to vector<24x128xbf16>
    %c1 = arith.constant 1 : index
    %c0_12 = arith.constant 0 : index
    %c0_13 = arith.constant 0 : index
    %25 = vector.load %arg2[%c1, %c0_12, %c0_13] : memref<5x48x48xbf16, #tpu.memory_space<vmem>>, vector<1x48x24xbf16>
    %26 = vector.shape_cast %25 : vector<1x48x24xbf16> to vector<48x24xbf16>
    %c1_14 = arith.constant 1 : index
    %c0_15 = arith.constant 0 : index
    %c0_16 = arith.constant 0 : index
    %27 = vector.load %arg3[%c1_14, %c0_15, %c0_16] : memref<5x48x1xf32, #tpu.memory_space<vmem>>, vector<1x48x1xf32>
    %28 = vector.shape_cast %27 : vector<1x48x1xf32> to vector<48x1xf32>
    %cst_17 = arith.constant dense<0.000000e+00> : vector<48x128xf32>
    %29 = tpu.matmul %26, %24, %cst_17 {dimension_numbers = #tpu.dot_dimension_numbers<[1], [0], [0], [1], [0, 0, 1, 1], [], []>} : vector<48x24xbf16>, vector<24x128xbf16>, vector<48x128xf32> -> vector<48x128xf32>
    %30 = vector.broadcast %28 : vector<48x1xf32> to vector<48x128xf32>
    %31 = arith.addf %29, %30 : vector<48x128xf32>
    %cst_18 = arith.constant 2.000000e+01 : f32
    %32 = vector.broadcast %cst_18 : f32 to vector<48x128xf32>
    %33 = arith.minimumf %31, %32 : vector<48x128xf32>
    %34 = math.exp %33 : vector<48x128xf32>
    %cst_19 = arith.constant 1.000000e+00 : f32
    %35 = vector.broadcast %cst_19 : f32 to vector<48x128xf32>
    %36 = arith.addf %35, %34 : vector<48x128xf32>
    %cst_20 = arith.constant 1.000000e+00 : f32
    %37 = vector.broadcast %cst_20 : f32 to vector<48x128xf32>
    %38 = arith.addf %37, %34 : vector<48x128xf32>
    %39 = arith.mulf %36, %38 : vector<48x128xf32>
    %cst_21 = arith.constant 1.000000e+00 : f32
    %40 = vector.broadcast %cst_21 : f32 to vector<48x128xf32>
    %41 = arith.subf %39, %40 : vector<48x128xf32>
    %cst_22 = arith.constant 1.000000e+00 : f32
    %42 = vector.broadcast %cst_22 : f32 to vector<48x128xf32>
    %43 = arith.addf %39, %42 : vector<48x128xf32>
    %44 = tpu.reciprocal %43 {approx = true} : vector<48x128xf32> -> vector<48x128xf32>
    %45 = arith.mulf %41, %44 : vector<48x128xf32>
    %46 = arith.mulf %31, %45 : vector<48x128xf32>
    %47 = arith.truncf %46 : vector<48x128xf32> to vector<48x128xbf16>
    %c2 = arith.constant 2 : index
    %c0_23 = arith.constant 0 : index
    %c0_24 = arith.constant 0 : index
    %48 = vector.load %arg2[%c2, %c0_23, %c0_24] : memref<5x48x48xbf16, #tpu.memory_space<vmem>>, vector<1x48x48xbf16>
    %49 = vector.shape_cast %48 : vector<1x48x48xbf16> to vector<48x48xbf16>
    %c2_25 = arith.constant 2 : index
    %c0_26 = arith.constant 0 : index
    %c0_27 = arith.constant 0 : index
    %50 = vector.load %arg3[%c2_25, %c0_26, %c0_27] : memref<5x48x1xf32, #tpu.memory_space<vmem>>, vector<1x48x1xf32>
    %51 = vector.shape_cast %50 : vector<1x48x1xf32> to vector<48x1xf32>
    %cst_28 = arith.constant dense<0.000000e+00> : vector<48x128xf32>
    %52 = tpu.matmul %49, %47, %cst_28 {dimension_numbers = #tpu.dot_dimension_numbers<[1], [0], [0], [1], [0, 0, 1, 1], [], []>} : vector<48x48xbf16>, vector<48x128xbf16>, vector<48x128xf32> -> vector<48x128xf32>
    %53 = vector.broadcast %51 : vector<48x1xf32> to vector<48x128xf32>
    %54 = arith.addf %52, %53 : vector<48x128xf32>
    %cst_29 = arith.constant 2.000000e+01 : f32
    %55 = vector.broadcast %cst_29 : f32 to vector<48x128xf32>
    %56 = arith.minimumf %54, %55 : vector<48x128xf32>
    %57 = math.exp %56 : vector<48x128xf32>
    %cst_30 = arith.constant 1.000000e+00 : f32
    %58 = vector.broadcast %cst_30 : f32 to vector<48x128xf32>
    %59 = arith.addf %58, %57 : vector<48x128xf32>
    %cst_31 = arith.constant 1.000000e+00 : f32
    %60 = vector.broadcast %cst_31 : f32 to vector<48x128xf32>
    %61 = arith.addf %60, %57 : vector<48x128xf32>
    %62 = arith.mulf %59, %61 : vector<48x128xf32>
    %cst_32 = arith.constant 1.000000e+00 : f32
    %63 = vector.broadcast %cst_32 : f32 to vector<48x128xf32>
    %64 = arith.subf %62, %63 : vector<48x128xf32>
    %cst_33 = arith.constant 1.000000e+00 : f32
    %65 = vector.broadcast %cst_33 : f32 to vector<48x128xf32>
    %66 = arith.addf %62, %65 : vector<48x128xf32>
    %67 = tpu.reciprocal %66 {approx = true} : vector<48x128xf32> -> vector<48x128xf32>
    %68 = arith.mulf %64, %67 : vector<48x128xf32>
    %69 = arith.mulf %54, %68 : vector<48x128xf32>
    %70 = arith.truncf %69 : vector<48x128xf32> to vector<48x128xbf16>
    %c3 = arith.constant 3 : index
    %c0_34 = arith.constant 0 : index
    %c0_35 = arith.constant 0 : index
    %71 = vector.load %arg2[%c3, %c0_34, %c0_35] : memref<5x48x48xbf16, #tpu.memory_space<vmem>>, vector<1x48x48xbf16>
    %72 = vector.shape_cast %71 : vector<1x48x48xbf16> to vector<48x48xbf16>
    %c3_36 = arith.constant 3 : index
    %c0_37 = arith.constant 0 : index
    %c0_38 = arith.constant 0 : index
    %73 = vector.load %arg3[%c3_36, %c0_37, %c0_38] : memref<5x48x1xf32, #tpu.memory_space<vmem>>, vector<1x48x1xf32>
    %74 = vector.shape_cast %73 : vector<1x48x1xf32> to vector<48x1xf32>
    %cst_39 = arith.constant dense<0.000000e+00> : vector<48x128xf32>
    %75 = tpu.matmul %72, %70, %cst_39 {dimension_numbers = #tpu.dot_dimension_numbers<[1], [0], [0], [1], [0, 0, 1, 1], [], []>} : vector<48x48xbf16>, vector<48x128xbf16>, vector<48x128xf32> -> vector<48x128xf32>
    %76 = vector.broadcast %74 : vector<48x1xf32> to vector<48x128xf32>
    %77 = arith.addf %75, %76 : vector<48x128xf32>
    %cst_40 = arith.constant 2.000000e+01 : f32
    %78 = vector.broadcast %cst_40 : f32 to vector<48x128xf32>
    %79 = arith.minimumf %77, %78 : vector<48x128xf32>
    %80 = math.exp %79 : vector<48x128xf32>
    %cst_41 = arith.constant 1.000000e+00 : f32
    %81 = vector.broadcast %cst_41 : f32 to vector<48x128xf32>
    %82 = arith.addf %81, %80 : vector<48x128xf32>
    %cst_42 = arith.constant 1.000000e+00 : f32
    %83 = vector.broadcast %cst_42 : f32 to vector<48x128xf32>
    %84 = arith.addf %83, %80 : vector<48x128xf32>
    %85 = arith.mulf %82, %84 : vector<48x128xf32>
    %cst_43 = arith.constant 1.000000e+00 : f32
    %86 = vector.broadcast %cst_43 : f32 to vector<48x128xf32>
    %87 = arith.subf %85, %86 : vector<48x128xf32>
    %cst_44 = arith.constant 1.000000e+00 : f32
    %88 = vector.broadcast %cst_44 : f32 to vector<48x128xf32>
    %89 = arith.addf %85, %88 : vector<48x128xf32>
    %90 = tpu.reciprocal %89 {approx = true} : vector<48x128xf32> -> vector<48x128xf32>
    %91 = arith.mulf %87, %90 : vector<48x128xf32>
    %92 = arith.mulf %77, %91 : vector<48x128xf32>
    %93 = arith.truncf %92 : vector<48x128xf32> to vector<48x128xbf16>
    %c4 = arith.constant 4 : index
    %c0_45 = arith.constant 0 : index
    %c0_46 = arith.constant 0 : index
    %94 = vector.load %arg2[%c4, %c0_45, %c0_46] : memref<5x48x48xbf16, #tpu.memory_space<vmem>>, vector<1x1x48xbf16>
    %95 = vector.shape_cast %94 : vector<1x1x48xbf16> to vector<1x48xbf16>
    %c4_47 = arith.constant 4 : index
    %c0_48 = arith.constant 0 : index
    %c0_49 = arith.constant 0 : index
    %96 = vector.load %arg3[%c4_47, %c0_48, %c0_49] : memref<5x48x1xf32, #tpu.memory_space<vmem>>, vector<1x1x1xf32>
    %97 = vector.shape_cast %96 : vector<1x1x1xf32> to vector<1x1xf32>
    %cst_50 = arith.constant dense<0.000000e+00> : vector<1x128xf32>
    %98 = tpu.matmul %95, %93, %cst_50 {dimension_numbers = #tpu.dot_dimension_numbers<[1], [0], [0], [1], [0, 0, 1, 1], [], []>} : vector<1x48xbf16>, vector<48x128xbf16>, vector<1x128xf32> -> vector<1x128xf32>
    %99 = vector.broadcast %97 : vector<1x1xf32> to vector<1x128xf32>
    %100 = arith.addf %98, %99 : vector<1x128xf32>
    %c0_51 = arith.constant 0 : index
    %c0_52 = arith.constant 0 : index
    %101 = vector.load %arg4[%c0_51, %c0_52] : memref<1x128xf32, #tpu.memory_space<vmem>>, vector<1x128xf32>
    tpu.vector_store %arg4[%c0_51, %c0_52], %100 {strides = array<i32>} : memref<1x128xf32, #tpu.memory_space<vmem>>, vector<1x128xf32>,
    return
  }
  func.func @transform_0(%arg0: i32) -> (i32, i32) {
    %c0_i32 = arith.constant 0 : i32
    %c0_i32_0 = arith.constant 0 : i32
    return %c0_i32, %arg0 : i32, i32
  }
  func.func @transform_1(%arg0: i32) -> (i32, i32, i32) {
    %c0_i32 = arith.constant 0 : i32
    %c0_i32_0 = arith.constant 0 : i32
    %c0_i32_1 = arith.constant 0 : i32
    %c0_i32_2 = arith.constant 0 : i32
    return %c0_i32, %c0_i32_0, %c0_i32_1 : i32, i32, i32
  }
  func.func @transform_2(%arg0: i32) -> (i32, i32, i32) {
    %c0_i32 = arith.constant 0 : i32
    %c0_i32_0 = arith.constant 0 : i32
    %c0_i32_1 = arith.constant 0 : i32
    %c0_i32_2 = arith.constant 0 : i32
    return %c0_i32, %c0_i32_0, %c0_i32_1 : i32, i32, i32
  }
  func.func @transform_3(%arg0: i32) -> (i32, i32) {
    %c0_i32 = arith.constant 0 : i32
    %c0_i32_0 = arith.constant 0 : i32
    return %c0_i32, %arg0 : i32, i32
  }
}

</mosaic_0001>

<llo_original>
// kernel: taoyuan_forward.1
$region0: #{taoyuan_forward.1}
  #allocation0 [shape = 'u32[]', space=smem, size = 0x4, offset = 0x4, fixed_abs, tag = 'smem constant byte address 0x4 - core index']
  #allocation1 [shape = 'u32[144,128]{1,0:T(1,128)}', space=vmem, size = 0x12000, scoped, tag = 'internal scratch']
  %s0 = inlined_call_operand.vmem [shape: f32[12,128], index: 0, kind: input, shape index: {}]
  %s1 = inlined_call_operand.vmem [shape: bf16[5,48,48], index: 1, kind: input, shape index: {}]
  %s2 = inlined_call_operand.vmem [shape: f32[5,48,1], index: 2, kind: input, shape index: {}]
  %s3 = inlined_call_operand.vmem [shape: f32[1,128], index: 3, kind: output, shape index: {}]
  %s4 = sld [smem:[#allocation0]]
  $region22: #{taoyuan_forward.1} parent=0
    _
  %s6 = ssub.s32 1, %s4
  %s7 = scalar_select 0, %s6, %s4
  // Predicated region
  $region2: #{taoyuan_forward.1} parent=0 // pred_check
    _
  $region3: #{taoyuan_forward.1} parent=0 // pred_check_branch
    %9 = sbr.rel (0) target = $region5
  $region4: #{taoyuan_forward.1} parent=0 // pred_region
    _
  $region5: #{taoyuan_forward.1} parent=0 // pred_fallthru
    _
  // Predicated region
  $region6: #{taoyuan_forward.1} parent=0 // pred_check
    _
  $region7: #{taoyuan_forward.1} parent=0 // pred_check_branch
    %11 = sbr.rel (0) target = $region9
  $region8: #{taoyuan_forward.1} parent=0 // pred_region
    _
  $region9: #{taoyuan_forward.1} parent=0 // pred_fallthru
    _
  // Predicated region
  $region10: #{taoyuan_forward.1} parent=0 // pred_check
    _
  $region11: #{taoyuan_forward.1} parent=0 // pred_check_branch
    %13 = sbr.rel (0) target = $region13
  $region12: #{taoyuan_forward.1} parent=0 // pred_region
    _
  $region13: #{taoyuan_forward.1} parent=0 // pred_fallthru
    _
  %v15 = vld [vmem:[%s0] sm:$0xff]
  %v16 = vld [vmem:[%s0 + $0x8] sm:$0xf]
  %v17 = vpack.c.bf16 %v16, %v15
  %v18 = vld [vmem:[%s1] sm:$0xf]
  %v19 = vld [vmem:[%s1 + $0x4] sm:$0xf]
  %v20 = vld [vmem:[%s1 + $0x8] sm:$0xf]
  %v21 = vld [vmem:[%s2] sm:$0xff]
  %v22 = vld [vmem:[%s2 + $0x8] sm:$0xff]
  %v23 = vld [vmem:[%s2 + $0x10] sm:$0xff]
  %25 = vset.pattern.permute.xlu0 0
  %26 = vperm.xlu0 %25, %v21
  %v27 = vpop.permute.xlu0 %26
  %30 = vset.pattern.permute.xlu0 0
  %31 = vperm.xlu0 %30, %v22
  %v32 = vpop.permute.xlu0 %31
  %35 = vset.pattern.permute.xlu0 0
  %36 = vperm.xlu0 %35, %v23
  %v37 = vpop.permute.xlu0 %36
  %v42 = vunpack.c.l.b16 %v18
  %v43 = vunpack.c.l.b16 %v19
  %v44 = vunpack.c.l.b16 %v20
  %v45 = vpack.c.b16 %v43, %v42
  %v46 = vpack.c.b16 %v44, %v44
  %vm47 = vcmask 97280
  %v49 = vsel %vm47, %v45, 0
  %v52 = vsel %vm47, %v46, 0
  %vm54 = vcmask 1045504
  %v56 = vsel %vm54, %v17, 0
  %58 = vmatprep.subr.bf16.mxu0 0
  %59 = vmatpush1.bf16.msra.mxu0 %v56
  %60 = vmatprep.subr.bf16.mxu0 0
  %61 = vmatpush1.bf16.msra.mxu0 0
  %62 = vmatprep.subr.bf16.mxu0 0
  %63 = vmatpush1.bf16.msra.mxu0 0
  %64 = vmatprep.subr.bf16.mxu0 0
  %65 = vmatpush1.bf16.msra.mxu0 0
  %66 = vmatprep.subr.bf16.mxu0 0
  %67 = vmatpush1.bf16.msra.mxu0 0
  %68 = vmatprep.subr.bf16.mxu0 0
  %69 = vmatpush1.bf16.msra.mxu0 0
  %70 = vmatprep.subr.bf16.mxu0 0
  %71 = vmatpush1.bf16.msra.mxu0 0
  %72 = vmatprep.subr.bf16.mxu0 0
  %73 = vmatpush1.bf16.msra.mxu0 0
  %74 = vmatprep.subr.bf16.mxu0 0
  %75 = vmatpush1.bf16.msra.mxu0 0
  %76 = vmatprep.subr.bf16.mxu0 0
  %77 = vmatpush1.bf16.msra.mxu0 0
  %78 = vmatprep.subr.bf16.mxu0 0
  %79 = vmatpush1.bf16.msra.mxu0 0
  %80 = vmatprep.subr.bf16.mxu0 0
  %81 = vmatpush1.bf16.msra.mxu0 0
  %82 = vmatprep.subr.bf16.mxu0 0
  %83 = vmatpush1.bf16.msra.mxu0 0
  %84 = vmatprep.subr.bf16.mxu0 0
  %85 = vmatpush1.bf16.msra.mxu0 0
  %86 = vmatprep.subr.bf16.mxu0 0
  %87 = vmatpush1.bf16.msra.mxu0 0
  %88 = vmatprep.subr.bf16.mxu0 0
  %89 = vmatpush1.bf16.msra.mxu0 0
  %90 = vmatprep.mubr.bf16.mxu0 0
  %91 = vmatmul.mubr.bf16.gmra.mrb[0].mxu0 %v49
  %v92 = vpop.f32.mrb[0].mxu0
  %v93 = vadd.f32 %v27, %v92
  %v94 = vpop.f32.mrb[0].mxu0
  %v95 = vpop.f32.mrb[0].mxu0
  %v96 = vadd.f32 %v32, %v95
  %v97 = vpop.f32.mrb[0].mxu0
  %98 = vmatprep.mubr.bf16.mxu0 0
  %99 = vmatmul.mubr.bf16.gmra.mrb[0].mxu0 %v52
  %v100 = vpop.f32.mrb[0].mxu0
  %v101 = vadd.f32 %v37, %v100
  %v102 = vpop.f32.mrb[0].mxu0
  %v103 = vpop.f32.mrb[0].mxu0
  %v104 = vpop.f32.mrb[0].mxu0
  %105 = vdwg.mxu0
  %v106 = vmin.f32 %v93, 20.0
  %v107 = vmin.f32 %v96, 20.0
  %v108 = vmin.f32 %v101, 20.0
  %v109 = vmul.f32 %v106, 1.442695
  %v110 = vpow.pop %v109
  %v111 = vmul.f32 %v107, 1.442695
  %v112 = vpow.pop %v111
  %v113 = vmul.f32 %v108, 1.442695
  %v114 = vpow.pop %v113
  %v115 = vadd.f32 %v110, 1.0
  %v116 = vadd.f32 %v112, 1.0
  %v117 = vadd.f32 %v114, 1.0
  %v118 = vmul.f32 %v115, %v115
  %v119 = vmul.f32 %v116, %v116
  %v120 = vmul.f32 %v117, %v117
  %v121 = vsub.f32 %v118, 1.0
  %v122 = vsub.f32 %v119, 1.0
  %v123 = vsub.f32 %v120, 1.0
  %v124 = vadd.f32 %v118, 1.0
  %v125 = vadd.f32 %v119, 1.0
  %v126 = vadd.f32 %v120, 1.0
  %v127 = vrcp.pop %v124
  %v128 = vrcp.pop %v125
  %v129 = vrcp.pop %v126
  %v130 = vmul.f32 %v121, %v127
  %v131 = vmul.f32 %v122, %v128
  %v132 = vmul.f32 %v123, %v129
  %v133 = vmul.f32 %v93, %v130
  %v134 = vmul.f32 %v96, %v131
  %v135 = vmul.f32 %v101, %v132
  %v136 = vpack.c.bf16 %v134, %v133
  %v137 = vpack.c.bf16 %v135, %v135
  %s138 = scalar_lea.vmem %s1, 24
  %v139 = vld [vmem:[%s138] sm:$0xf]
  %v140 = vld [vmem:[%s138 + $0x4] sm:$0xf]
  %v141 = vld [vmem:[%s138 + $0x8] sm:$0xf]
  %v142 = vld [vmem:[%s138 + $0xc] sm:$0xf]
  %v143 = vld [vmem:[%s138 + $0x10] sm:$0xf]
  %v144 = vld [vmem:[%s138 + $0x14] sm:$0xf]
  %s145 = scalar_lea.vmem %s2, 48
  %v146 = vld [vmem:[%s145] sm:$0xff]
  %v147 = vld [vmem:[%s145 + $0x8] sm:$0xff]
  %v148 = vld [vmem:[%s145 + $0x10] sm:$0xff]
  %v149 = vld [vmem:[%s145 + $0x18] sm:$0xff]
  %v150 = vld [vmem:[%s145 + $0x20] sm:$0xff]
  %v151 = vld [vmem:[%s145 + $0x28] sm:$0xff]
  %153 = vset.pattern.permute.xlu0 0
  %154 = vperm.xlu0 %153, %v146
  %v155 = vpop.permute.xlu0 %154
  %158 = vset.pattern.permute.xlu0 0
  %159 = vperm.xlu0 %158, %v147
  %v160 = vpop.permute.xlu0 %159
  %163 = vset.pattern.permute.xlu0 0
  %164 = vperm.xlu0 %163, %v148
  %v165 = vpop.permute.xlu0 %164
  %168 = vset.pattern.permute.xlu0 0
  %169 = vperm.xlu0 %168, %v149
  %v170 = vpop.permute.xlu0 %169
  %173 = vset.pattern.permute.xlu0 0
  %174 = vperm.xlu0 %173, %v150
  %v175 = vpop.permute.xlu0 %174
  %178 = vset.pattern.permute.xlu0 0
  %179 = vperm.xlu0 %178, %v151
  %v180 = vpop.permute.xlu0 %179
  %v188 = vunpack.c.l.b16 %v139
  %v189 = vunpack.c.l.b16 %v140
  %v190 = vunpack.c.l.b16 %v141
  %v191 = vunpack.c.l.b16 %v142
  %v192 = vunpack.c.l.b16 %v143
  %v193 = vunpack.c.l.b16 %v144
  %v194 = vpack.c.b16 %v189, %v188
  %v195 = vpack.c.b16 %v191, %v190
  %v196 = vpack.c.b16 %v193, %v192
  %vm197 = vcmask 195584
  %v199 = vsel %vm197, %v194, 0
  %v202 = vsel %vm197, %v195, 0
  %v205 = vsel %vm197, %v196, 0
  %vm207 = vcmask 1043456
  %v209 = vsel %vm207, %v137, 0
  %211 = vmatprep.subr.bf16.mxu0 0
  %212 = vmatpush1.bf16.msra.mxu0 %v136
  %213 = vmatprep.subr.bf16.mxu0 0
  %214 = vmatpush1.bf16.msra.mxu0 %v209
  %215 = vmatprep.subr.bf16.mxu0 0
  %216 = vmatpush1.bf16.msra.mxu0 0
  %217 = vmatprep.subr.bf16.mxu0 0
  %218 = vmatpush1.bf16.msra.mxu0 0
  %219 = vmatprep.subr.bf16.mxu0 0
  %220 = vmatpush1.bf16.msra.mxu0 0
  %221 = vmatprep.subr.bf16.mxu0 0
  %222 = vmatpush1.bf16.msra.mxu0 0
  %223 = vmatprep.subr.bf16.mxu0 0
  %224 = vmatpush1.bf16.msra.mxu0 0
  %225 = vmatprep.subr.bf16.mxu0 0
  %226 = vmatpush1.bf16.msra.mxu0 0
  %227 = vmatprep.subr.bf16.mxu0 0
  %228 = vmatpush1.bf16.msra.mxu0 0
  %229 = vmatprep.subr.bf16.mxu0 0
  %230 = vmatpush1.bf16.msra.mxu0 0
  %231 = vmatprep.subr.bf16.mxu0 0
  %232 = vmatpush1.bf16.msra.mxu0 0
  %233 = vmatprep.subr.bf16.mxu0 0
  %234 = vmatpush1.bf16.msra.mxu0 0
  %235 = vmatprep.subr.bf16.mxu0 0
  %236 = vmatpush1.bf16.msra.mxu0 0
  %237 = vmatprep.subr.bf16.mxu0 0
  %238 = vmatpush1.bf16.msra.mxu0 0
  %239 = vmatprep.subr.bf16.mxu0 0
  %240 = vmatpush1.bf16.msra.mxu0 0
  %241 = vmatprep.subr.bf16.mxu0 0
  %242 = vmatpush1.bf16.msra.mxu0 0
  %243 = vmatprep.mubr.bf16.mxu0 0
  %244 = vmatmul.mubr.bf16.gmra.mrb[0].mxu0 %v199
  %v245 = vpop.f32.mrb[0].mxu0
  %v246 = vadd.f32 %v155, %v245
  %v247 = vpop.f32.mrb[0].mxu0
  %v248 = vpop.f32.mrb[0].mxu0
  %v249 = vadd.f32 %v160, %v248
  %v250 = vpop.f32.mrb[0].mxu0
  %251 = vmatprep.mubr.bf16.mxu0 0
  %252 = vmatmul.mubr.bf16.gmra.mrb[0].mxu0 %v202
  %v253 = vpop.f32.mrb[0].mxu0
  %v254 = vadd.f32 %v165, %v253
  %v255 = vpop.f32.mrb[0].mxu0
  %v256 = vpop.f32.mrb[0].mxu0
  %v257 = vadd.f32 %v170, %v256
  %v258 = vpop.f32.mrb[0].mxu0
  %259 = vmatprep.mubr.bf16.mxu0 0
  %260 = vmatmul.mubr.bf16.gmra.mrb[0].mxu0 %v205
  %v261 = vpop.f32.mrb[0].mxu0
  %v262 = vadd.f32 %v175, %v261
  %v263 = vpop.f32.mrb[0].mxu0
  %v264 = vpop.f32.mrb[0].mxu0
  %v265 = vadd.f32 %v180, %v264
  %v266 = vpop.f32.mrb[0].mxu0
  %267 = vdwg.mxu0
  %v268 = vmin.f32 %v246, 20.0
  %v269 = vmin.f32 %v249, 20.0
  %v270 = vmin.f32 %v254, 20.0
  %v271 = vmin.f32 %v257, 20.0
  %v272 = vmin.f32 %v262, 20.0
  %v273 = vmin.f32 %v265, 20.0
  %v274 = vmul.f32 %v268, 1.442695
  %v275 = vpow.pop %v274
  %v276 = vmul.f32 %v269, 1.442695
  %v277 = vpow.pop %v276
  %v278 = vmul.f32 %v270, 1.442695
  %v279 = vpow.pop %v278
  %v280 = vmul.f32 %v271, 1.442695
  %v281 = vpow.pop %v280
  %v282 = vmul.f32 %v272, 1.442695
  %v283 = vpow.pop %v282
  %v284 = vmul.f32 %v273, 1.442695
  %v285 = vpow.pop %v284
  %v286 = vadd.f32 %v275, 1.0
  %v287 = vadd.f32 %v277, 1.0
  %v288 = vadd.f32 %v279, 1.0
  %v289 = vadd.f32 %v281, 1.0
  %v290 = vadd.f32 %v283, 1.0
  %v291 = vadd.f32 %v285, 1.0
  %v292 = vmul.f32 %v286, %v286
  %v293 = vmul.f32 %v287, %v287
  %v294 = vmul.f32 %v288, %v288
  %v295 = vmul.f32 %v289, %v289
  %v296 = vmul.f32 %v290, %v290
  %v297 = vmul.f32 %v291, %v291
  %v298 = vsub.f32 %v292, 1.0
  %v299 = vsub.f32 %v293, 1.0
  %v300 = vsub.f32 %v294, 1.0
  %v301 = vsub.f32 %v295, 1.0
  %v302 = vsub.f32 %v296, 1.0
  %v303 = vsub.f32 %v297, 1.0
  %v304 = vadd.f32 %v292, 1.0
  %v305 = vadd.f32 %v293, 1.0
  %v306 = vadd.f32 %v294, 1.0
  %v307 = vadd.f32 %v295, 1.0
  %v308 = vadd.f32 %v296, 1.0
  %v309 = vadd.f32 %v297, 1.0
  %v310 = vrcp.pop %v304
  %v311 = vrcp.pop %v305
  %v312 = vrcp.pop %v306
  %v313 = vrcp.pop %v307
  %v314 = vrcp.pop %v308
  %v315 = vrcp.pop %v309
  %v316 = vmul.f32 %v298, %v310
  %v317 = vmul.f32 %v299, %v311
  %v318 = vmul.f32 %v300, %v312
  %v319 = vmul.f32 %v301, %v313
  %v320 = vmul.f32 %v302, %v314
  %v321 = vmul.f32 %v303, %v315
  %v322 = vmul.f32 %v246, %v316
  %v323 = vmul.f32 %v249, %v317
  %v324 = vmul.f32 %v254, %v318
  %v325 = vmul.f32 %v257, %v319
  %v326 = vmul.f32 %v262, %v320
  %v327 = vmul.f32 %v265, %v321
  %v328 = vpack.c.bf16 %v323, %v322
  %v329 = vpack.c.bf16 %v325, %v324
  %v330 = vpack.c.bf16 %v327, %v326
  %s331 = scalar_lea.vmem %s1, 48
  %v332 = vld [vmem:[%s331] sm:$0xf]
  %v333 = vld [vmem:[%s331 + $0x4] sm:$0xf]
  %v334 = vld [vmem:[%s331 + $0x8] sm:$0xf]
  %v335 = vld [vmem:[%s331 + $0xc] sm:$0xf]
  %v336 = vld [vmem:[%s331 + $0x10] sm:$0xf]
  %v337 = vld [vmem:[%s331 + $0x14] sm:$0xf]
  %s338 = scalar_lea.vmem %s2, 96
  %v339 = vld [vmem:[%s338] sm:$0xff]
  %v340 = vld [vmem:[%s338 + $0x8] sm:$0xff]
  %v341 = vld [vmem:[%s338 + $0x10] sm:$0xff]
  %v342 = vld [vmem:[%s338 + $0x18] sm:$0xff]
  %v343 = vld [vmem:[%s338 + $0x20] sm:$0xff]
  %v344 = vld [vmem:[%s338 + $0x28] sm:$0xff]
  %346 = vset.pattern.permute.xlu0 0
  %347 = vperm.xlu0 %346, %v339
  %v348 = vpop.permute.xlu0 %347
  %351 = vset.pattern.permute.xlu0 0
  %352 = vperm.xlu0 %351, %v340
  %v353 = vpop.permute.xlu0 %352
  %356 = vset.pattern.permute.xlu0 0
  %357 = vperm.xlu0 %356, %v341
  %v358 = vpop.permute.xlu0 %357
  %361 = vset.pattern.permute.xlu0 0
  %362 = vperm.xlu0 %361, %v342
  %v363 = vpop.permute.xlu0 %362
  %366 = vset.pattern.permute.xlu0 0
  %367 = vperm.xlu0 %366, %v343
  %v368 = vpop.permute.xlu0 %367
  %371 = vset.pattern.permute.xlu0 0
  %372 = vperm.xlu0 %371, %v344
  %v373 = vpop.permute.xlu0 %372
  %v381 = vunpack.c.l.b16 %v332
  %v382 = vunpack.c.l.b16 %v333
  %v383 = vunpack.c.l.b16 %v334
  %v384 = vunpack.c.l.b16 %v335
  %v385 = vunpack.c.l.b16 %v336
  %v386 = vunpack.c.l.b16 %v337
  %v387 = vpack.c.b16 %v382, %v381
  %v388 = vpack.c.b16 %v384, %v383
  %v389 = vpack.c.b16 %v386, %v385
  %vm390 = vcmask 392192
  %v392 = vsel %vm390, %v387, 0
  %v395 = vsel %vm390, %v388, 0
  %v398 = vsel %vm390, %v389, 0
  %400 = vmatprep.subr.bf16.mxu0 0
  %401 = vmatpush1.bf16.msra.mxu0 %v328
  %402 = vmatprep.subr.bf16.mxu0 0
  %403 = vmatpush1.bf16.msra.mxu0 %v329
  %404 = vmatprep.subr.bf16.mxu0 0
  %405 = vmatpush1.bf16.msra.mxu0 %v330
  %406 = vmatprep.subr.bf16.mxu0 0
  %407 = vmatpush1.bf16.msra.mxu0 0
  %408 = vmatprep.subr.bf16.mxu0 0
  %409 = vmatpush1.bf16.msra.mxu0 0
  %410 = vmatprep.subr.bf16.mxu0 0
  %411 = vmatpush1.bf16.msra.mxu0 0
  %412 = vmatprep.subr.bf16.mxu0 0
  %413 = vmatpush1.bf16.msra.mxu0 0
  %414 = vmatprep.subr.bf16.mxu0 0
  %415 = vmatpush1.bf16.msra.mxu0 0
  %416 = vmatprep.subr.bf16.mxu0 0
  %417 = vmatpush1.bf16.msra.mxu0 0
  %418 = vmatprep.subr.bf16.mxu0 0
  %419 = vmatpush1.bf16.msra.mxu0 0
  %420 = vmatprep.subr.bf16.mxu0 0
  %421 = vmatpush1.bf16.msra.mxu0 0
  %422 = vmatprep.subr.bf16.mxu0 0
  %423 = vmatpush1.bf16.msra.mxu0 0
  %424 = vmatprep.subr.bf16.mxu0 0
  %425 = vmatpush1.bf16.msra.mxu0 0
  %426 = vmatprep.subr.bf16.mxu0 0
  %427 = vmatpush1.bf16.msra.mxu0 0
  %428 = vmatprep.subr.bf16.mxu0 0
  %429 = vmatpush1.bf16.msra.mxu0 0
  %430 = vmatprep.subr.bf16.mxu0 0
  %431 = vmatpush1.bf16.msra.mxu0 0
  %432 = vmatprep.mubr.bf16.mxu0 0
  %433 = vmatmul.mubr.bf16.gmra.mrb[0].mxu0 %v392
  %v434 = vpop.f32.mrb[0].mxu0
  %v435 = vadd.f32 %v348, %v434
  %v436 = vpop.f32.mrb[0].mxu0
  %v437 = vpop.f32.mrb[0].mxu0
  %v438 = vadd.f32 %v353, %v437
  %v439 = vpop.f32.mrb[0].mxu0
  %440 = vmatprep.mubr.bf16.mxu0 0
  %441 = vmatmul.mubr.bf16.gmra.mrb[0].mxu0 %v395
  %v442 = vpop.f32.mrb[0].mxu0
  %v443 = vadd.f32 %v358, %v442
  %v444 = vpop.f32.mrb[0].mxu0
  %v445 = vpop.f32.mrb[0].mxu0
  %v446 = vadd.f32 %v363, %v445
  %v447 = vpop.f32.mrb[0].mxu0
  %448 = vmatprep.mubr.bf16.mxu0 0
  %449 = vmatmul.mubr.bf16.gmra.mrb[0].mxu0 %v398
  %v450 = vpop.f32.mrb[0].mxu0
  %v451 = vadd.f32 %v368, %v450
  %v452 = vpop.f32.mrb[0].mxu0
  %v453 = vpop.f32.mrb[0].mxu0
  %v454 = vadd.f32 %v373, %v453
  %v455 = vpop.f32.mrb[0].mxu0
  %456 = vdwg.mxu0
  %v457 = vmin.f32 %v435, 20.0
  %v458 = vmin.f32 %v438, 20.0
  %v459 = vmin.f32 %v443, 20.0
  %v460 = vmin.f32 %v446, 20.0
  %v461 = vmin.f32 %v451, 20.0
  %v462 = vmin.f32 %v454, 20.0
  %v463 = vmul.f32 %v457, 1.442695
  %v464 = vpow.pop %v463
  %v465 = vmul.f32 %v458, 1.442695
  %v466 = vpow.pop %v465
  %v467 = vmul.f32 %v459, 1.442695
  %v468 = vpow.pop %v467
  %v469 = vmul.f32 %v460, 1.442695
  %v470 = vpow.pop %v469
  %v471 = vmul.f32 %v461, 1.442695
  %v472 = vpow.pop %v471
  %v473 = vmul.f32 %v462, 1.442695
  %v474 = vpow.pop %v473
  %v475 = vadd.f32 %v464, 1.0
  %v476 = vadd.f32 %v466, 1.0
  %v477 = vadd.f32 %v468, 1.0
  %v478 = vadd.f32 %v470, 1.0
  %v479 = vadd.f32 %v472, 1.0
  %v480 = vadd.f32 %v474, 1.0
  %v481 = vmul.f32 %v475, %v475
  %v482 = vmul.f32 %v476, %v476
  %v483 = vmul.f32 %v477, %v477
  %v484 = vmul.f32 %v478, %v478
  %v485 = vmul.f32 %v479, %v479
  %v486 = vmul.f32 %v480, %v480
  %v487 = vsub.f32 %v481, 1.0
  %v488 = vsub.f32 %v482, 1.0
  %v489 = vsub.f32 %v483, 1.0
  %v490 = vsub.f32 %v484, 1.0
  %v491 = vsub.f32 %v485, 1.0
  %v492 = vsub.f32 %v486, 1.0
  %v493 = vadd.f32 %v481, 1.0
  %v494 = vadd.f32 %v482, 1.0
  %v495 = vadd.f32 %v483, 1.0
  %v496 = vadd.f32 %v484, 1.0
  %v497 = vadd.f32 %v485, 1.0
  %v498 = vadd.f32 %v486, 1.0
  %v499 = vrcp.pop %v493
  %v500 = vrcp.pop %v494
  %v501 = vrcp.pop %v495
  %v502 = vrcp.pop %v496
  %v503 = vrcp.pop %v497
  %v504 = vrcp.pop %v498
  %v505 = vmul.f32 %v487, %v499
  %v506 = vmul.f32 %v488, %v500
  %v507 = vmul.f32 %v489, %v501
  %v508 = vmul.f32 %v490, %v502
  %v509 = vmul.f32 %v491, %v503
  %v510 = vmul.f32 %v492, %v504
  %v511 = vmul.f32 %v435, %v505
  %v512 = vmul.f32 %v438, %v506
  %v513 = vmul.f32 %v443, %v507
  %v514 = vmul.f32 %v446, %v508
  %v515 = vmul.f32 %v451, %v509
  %v516 = vmul.f32 %v454, %v510
  %v517 = vpack.c.bf16 %v512, %v511
  %v518 = vpack.c.bf16 %v514, %v513
  %v519 = vpack.c.bf16 %v516, %v515
  %s520 = scalar_lea.vmem %s1, 72
  %v521 = vld [vmem:[%s520] sm:$0xf]
  %v522 = vld [vmem:[%s520 + $0x4] sm:$0xf]
  %v523 = vld [vmem:[%s520 + $0x8] sm:$0xf]
  %v524 = vld [vmem:[%s520 + $0xc] sm:$0xf]
  %v525 = vld [vmem:[%s520 + $0x10] sm:$0xf]
  %v526 = vld [vmem:[%s520 + $0x14] sm:$0xf]
  %s527 = scalar_lea.vmem %s2, 144
  %v528 = vld [vmem:[%s527] sm:$0xff]
  %v529 = vld [vmem:[%s527 + $0x8] sm:$0xff]
  %v530 = vld [vmem:[%s527 + $0x10] sm:$0xff]
  %v531 = vld [vmem:[%s527 + $0x18] sm:$0xff]
  %v532 = vld [vmem:[%s527 + $0x20] sm:$0xff]
  %v533 = vld [vmem:[%s527 + $0x28] sm:$0xff]
  %535 = vset.pattern.permute.xlu0 0
  %536 = vperm.xlu0 %535, %v528
  %v537 = vpop.permute.xlu0 %536
  %540 = vset.pattern.permute.xlu0 0
  %541 = vperm.xlu0 %540, %v529
  %v542 = vpop.permute.xlu0 %541
  %545 = vset.pattern.permute.xlu0 0
  %546 = vperm.xlu0 %545, %v530
  %v547 = vpop.permute.xlu0 %546
  %550 = vset.pattern.permute.xlu0 0
  %551 = vperm.xlu0 %550, %v531
  %v552 = vpop.permute.xlu0 %551
  %555 = vset.pattern.permute.xlu0 0
  %556 = vperm.xlu0 %555, %v532
  %v557 = vpop.permute.xlu0 %556
  %560 = vset.pattern.permute.xlu0 0
  %561 = vperm.xlu0 %560, %v533
  %v562 = vpop.permute.xlu0 %561
  %v570 = vunpack.c.l.b16 %v521
  %v571 = vunpack.c.l.b16 %v522
  %v572 = vunpack.c.l.b16 %v523
  %v573 = vunpack.c.l.b16 %v524
  %v574 = vunpack.c.l.b16 %v525
  %v575 = vunpack.c.l.b16 %v526
  %v576 = vpack.c.b16 %v571, %v570
  %v577 = vpack.c.b16 %v573, %v572
  %v578 = vpack.c.b16 %v575, %v574
  %v580 = vsel %vm390, %v576, 0
  %v583 = vsel %vm390, %v577, 0
  %v586 = vsel %vm390, %v578, 0
  %588 = vmatprep.subr.bf16.mxu0 0
  %589 = vmatpush1.bf16.msra.mxu0 %v517
  %590 = vmatprep.subr.bf16.mxu0 0
  %591 = vmatpush1.bf16.msra.mxu0 %v518
  %592 = vmatprep.subr.bf16.mxu0 0
  %593 = vmatpush1.bf16.msra.mxu0 %v519
  %594 = vmatprep.subr.bf16.mxu0 0
  %595 = vmatpush1.bf16.msra.mxu0 0
  %596 = vmatprep.subr.bf16.mxu0 0
  %597 = vmatpush1.bf16.msra.mxu0 0
  %598 = vmatprep.subr.bf16.mxu0 0
  %599 = vmatpush1.bf16.msra.mxu0 0
  %600 = vmatprep.subr.bf16.mxu0 0
  %601 = vmatpush1.bf16.msra.mxu0 0
  %602 = vmatprep.subr.bf16.mxu0 0
  %603 = vmatpush1.bf16.msra.mxu0 0
  %604 = vmatprep.subr.bf16.mxu0 0
  %605 = vmatpush1.bf16.msra.mxu0 0
  %606 = vmatprep.subr.bf16.mxu0 0
  %607 = vmatpush1.bf16.msra.mxu0 0
  %608 = vmatprep.subr.bf16.mxu0 0
  %609 = vmatpush1.bf16.msra.mxu0 0
  %610 = vmatprep.subr.bf16.mxu0 0
  %611 = vmatpush1.bf16.msra.mxu0 0
  %612 = vmatprep.subr.bf16.mxu0 0
  %613 = vmatpush1.bf16.msra.mxu0 0
  %614 = vmatprep.subr.bf16.mxu0 0
  %615 = vmatpush1.bf16.msra.mxu0 0
  %616 = vmatprep.subr.bf16.mxu0 0
  %617 = vmatpush1.bf16.msra.mxu0 0
  %618 = vmatprep.subr.bf16.mxu0 0
  %619 = vmatpush1.bf16.msra.mxu0 0
  %620 = vmatprep.mubr.bf16.mxu0 0
  %621 = vmatmul.mubr.bf16.gmra.mrb[0].mxu0 %v580
  %v622 = vpop.f32.mrb[0].mxu0
  %v623 = vadd.f32 %v537, %v622
  %v624 = vpop.f32.mrb[0].mxu0
  %v625 = vpop.f32.mrb[0].mxu0
  %v626 = vadd.f32 %v542, %v625
  %v627 = vpop.f32.mrb[0].mxu0
  %628 = vmatprep.mubr.bf16.mxu0 0
  %629 = vmatmul.mubr.bf16.gmra.mrb[0].mxu0 %v583
  %v630 = vpop.f32.mrb[0].mxu0
  %v631 = vadd.f32 %v547, %v630
  %v632 = vpop.f32.mrb[0].mxu0
  %v633 = vpop.f32.mrb[0].mxu0
  %v634 = vadd.f32 %v552, %v633
  %v635 = vpop.f32.mrb[0].mxu0
  %636 = vmatprep.mubr.bf16.mxu0 0
  %637 = vmatmul.mubr.bf16.gmra.mrb[0].mxu0 %v586
  %v638 = vpop.f32.mrb[0].mxu0
  %v639 = vadd.f32 %v557, %v638
  %v640 = vpop.f32.mrb[0].mxu0
  %v641 = vpop.f32.mrb[0].mxu0
  %v642 = vadd.f32 %v562, %v641
  %v643 = vpop.f32.mrb[0].mxu0
  %644 = vdwg.mxu0
  %v645 = vmin.f32 %v623, 20.0
  %v646 = vmin.f32 %v626, 20.0
  %v647 = vmin.f32 %v631, 20.0
  %v648 = vmin.f32 %v634, 20.0
  %v649 = vmin.f32 %v639, 20.0
  %v650 = vmin.f32 %v642, 20.0
  %v651 = vmul.f32 %v645, 1.442695
  %v652 = vpow.pop %v651
  %v653 = vmul.f32 %v646, 1.442695
  %v654 = vpow.pop %v653
  %v655 = vmul.f32 %v647, 1.442695
  %v656 = vpow.pop %v655
  %v657 = vmul.f32 %v648, 1.442695
  %v658 = vpow.pop %v657
  %v659 = vmul.f32 %v649, 1.442695
  %v660 = vpow.pop %v659
  %v661 = vmul.f32 %v650, 1.442695
  %v662 = vpow.pop %v661
  %v663 = vadd.f32 %v652, 1.0
  %v664 = vadd.f32 %v654, 1.0
  %v665 = vadd.f32 %v656, 1.0
  %v666 = vadd.f32 %v658, 1.0
  %v667 = vadd.f32 %v660, 1.0
  %v668 = vadd.f32 %v662, 1.0
  %v669 = vmul.f32 %v663, %v663
  %v670 = vmul.f32 %v664, %v664
  %v671 = vmul.f32 %v665, %v665
  %v672 = vmul.f32 %v666, %v666
  %v673 = vmul.f32 %v667, %v667
  %v674 = vmul.f32 %v668, %v668
  %v675 = vsub.f32 %v669, 1.0
  %v676 = vsub.f32 %v670, 1.0
  %v677 = vsub.f32 %v671, 1.0
  %v678 = vsub.f32 %v672, 1.0
  %v679 = vsub.f32 %v673, 1.0
  %v680 = vsub.f32 %v674, 1.0
  %v681 = vadd.f32 %v669, 1.0
  %v682 = vadd.f32 %v670, 1.0
  %v683 = vadd.f32 %v671, 1.0
  %v684 = vadd.f32 %v672, 1.0
  %v685 = vadd.f32 %v673, 1.0
  %v686 = vadd.f32 %v674, 1.0
  %v687 = vrcp.pop %v681
  %v688 = vrcp.pop %v682
  %v689 = vrcp.pop %v683
  %v690 = vrcp.pop %v684
  %v691 = vrcp.pop %v685
  %v692 = vrcp.pop %v686
  %v693 = vmul.f32 %v675, %v687
  %v694 = vmul.f32 %v676, %v688
  %v695 = vmul.f32 %v677, %v689
  %v696 = vmul.f32 %v678, %v690
  %v697 = vmul.f32 %v679, %v691
  %v698 = vmul.f32 %v680, %v692
  %v699 = vmul.f32 %v623, %v693
  %v700 = vmul.f32 %v626, %v694
  %v701 = vmul.f32 %v631, %v695
  %v702 = vmul.f32 %v634, %v696
  %v703 = vmul.f32 %v639, %v697
  %v704 = vmul.f32 %v642, %v698
  %v705 = vpack.c.bf16 %v700, %v699
  %v706 = vpack.c.bf16 %v702, %v701
  %v707 = vpack.c.bf16 %v704, %v703
  %s708 = scalar_lea.vmem %s1, 96
  %v709 = vld [vmem:[%s708] sm:$0x1]
  %s710 = scalar_lea.vmem %s2, 192
  %v711 = vld [vmem:[%s710] sm:$0x1]
  %713 = vset.pattern.permute.xlu0 0
  %714 = vperm.xlu0 %713, %v711
  %v715 = vpop.permute.xlu0 %714
  %v718 = vsel %vm390, %v709, 0
  %720 = vmatprep.subr.bf16.mxu0 0
  %721 = vmatpush1.bf16.msra.mxu0 %v705
  %722 = vmatprep.subr.bf16.mxu0 0
  %723 = vmatpush1.bf16.msra.mxu0 %v706
  %724 = vmatprep.subr.bf16.mxu0 0
  %725 = vmatpush1.bf16.msra.mxu0 %v707
  %726 = vmatprep.subr.bf16.mxu0 0
  %727 = vmatpush1.bf16.msra.mxu0 0
  %728 = vmatprep.subr.bf16.mxu0 0
  %729 = vmatpush1.bf16.msra.mxu0 0
  %730 = vmatprep.subr.bf16.mxu0 0
  %731 = vmatpush1.bf16.msra.mxu0 0
  %732 = vmatprep.subr.bf16.mxu0 0
  %733 = vmatpush1.bf16.msra.mxu0 0
  %734 = vmatprep.subr.bf16.mxu0 0
  %735 = vmatpush1.bf16.msra.mxu0 0
  %736 = vmatprep.subr.bf16.mxu0 0
  %737 = vmatpush1.bf16.msra.mxu0 0
  %738 = vmatprep.subr.bf16.mxu0 0
  %739 = vmatpush1.bf16.msra.mxu0 0
  %740 = vmatprep.subr.bf16.mxu0 0
  %741 = vmatpush1.bf16.msra.mxu0 0
  %742 = vmatprep.subr.bf16.mxu0 0
  %743 = vmatpush1.bf16.msra.mxu0 0
  %744 = vmatprep.subr.bf16.mxu0 0
  %745 = vmatpush1.bf16.msra.mxu0 0
  %746 = vmatprep.subr.bf16.mxu0 0
  %747 = vmatpush1.bf16.msra.mxu0 0
  %748 = vmatprep.subr.bf16.mxu0 0
  %749 = vmatpush1.bf16.msra.mxu0 0
  %750 = vmatprep.subr.bf16.mxu0 0
  %751 = vmatpush1.bf16.msra.mxu0 0
  %752 = vmatprep.mubr.bf16.mxu0 0
  %753 = vmatmul.mubr.bf16.gmra.mrb[0].mxu0 %v718
  %v754 = vpop.f32.mrb[0].mxu0
  %v755 = vadd.f32 %v715, %v754
  %v756 = vpop.f32.mrb[0].mxu0
  %v757 = vpop.f32.mrb[0].mxu0
  %v758 = vpop.f32.mrb[0].mxu0
  %759 = vdwg.mxu0
  %760 = vst [vmem:[%s3] sm:$0x1] %v755
  // Predicated region
  $region14: #{taoyuan_forward.1} parent=0 // pred_check
    _
  $region15: #{taoyuan_forward.1} parent=0 // pred_check_branch
    %762 = sbr.rel (0) target = $region17
  $region16: #{taoyuan_forward.1} parent=0 // pred_region
    _
  $region17: #{taoyuan_forward.1} parent=0 // pred_fallthru
    _
  // Predicated region
  $region18: #{taoyuan_forward.1} parent=0 // pred_check
    _
  $region19: #{taoyuan_forward.1} parent=0 // pred_check_branch
    %764 = sbr.rel (0) target = $region21
  $region20: #{taoyuan_forward.1} parent=0 // pred_region
    _
  $region21: #{taoyuan_forward.1} parent=0 // pred_fallthru
    _

</llo_original>
